<compile_context>
chip_gen: v5e
topology: v5e:2x2
jax: 0.10.0
libtpu: 0.0.40
codegen_flags: <defaults>
</compile_context>

<pallas_src>
import functools

import jax
import jax.numpy as jnp
from jax import lax
from jax.experimental import pallas as pl
from jax.experimental.pallas import tpu as pltpu


def _pab_kernel(xl_ref, xr_ref, w_ref, b_ref, cxr_ref, enh_ref, *,
                block_rows, width):
    """Block-diagonal width attention on channel-first slabs.

    xl_ref / xr_ref : (1, C, T) slabs of left / right features, T = TH*W.
    w_ref           : (2C, C) bf16 stacked fused conv+BN weights
                      (rows [:C] = query with 1/C folded, rows [C:] = key).
    b_ref           : (2C, 1) f32 stacked fused biases (query part 1/C-scaled).
    cxr_ref/enh_ref : (1, C, T) output slabs (channel-first == NCHW layout).
    """
    t = block_rows * width

    # bf16 MXU operands; f32 accumulation everywhere.
    xl = xl_ref[0].astype(jnp.bfloat16)           # (C, T)
    xr = xr_ref[0].astype(jnp.bfloat16)           # (C, T)
    w = w_ref[...]                                # (2C, C) bf16
    b = b_ref[...]                                # (2C, 1) f32
    c = xl.shape[0]

    # One stacked projection per slab: (2C, C) @ (C, T) -> (2C, T).
    proj_l = jnp.dot(w, xl, preferred_element_type=jnp.float32) + b
    proj_r = jnp.dot(w, xr, preferred_element_type=jnp.float32) + b

    # Static sublane slices (C is a multiple of 8) -> free views.
    q_l = proj_l[:c].astype(jnp.bfloat16)         # query(left), 1/C folded
    k_l = proj_l[c:].astype(jnp.bfloat16)         # key(left)
    q_r = proj_r[:c].astype(jnp.bfloat16)
    k_r = proj_r[c:].astype(jnp.bfloat16)

    # In-kernel block-diagonal mask: queries attend only to keys of the same
    # image row.  Row ids via exact float floor((idx + 0.5)/W) (no int div);
    # error << 1/(2W) so the floor is exact for idx < 2^22.
    if block_rows > 1:
        jdx = lax.broadcasted_iota(jnp.int32, (t, t), 0).astype(jnp.float32)
        idx = lax.broadcasted_iota(jnp.int32, (t, t), 1).astype(jnp.float32)
        inv_w = jnp.float32(1.0 / width)
        rj = jnp.floor((jdx + jnp.float32(0.5)) * inv_w)
        ri = jnp.floor((idx + jnp.float32(0.5)) * inv_w)
        neg_mask = jnp.where(rj == ri, jnp.float32(0.0), jnp.float32(-1e30))
    else:
        neg_mask = None                           # per-row fast path: no mask

    def attend(q, k, v):
        # Transposed score layout: sT[j, i] = sum_c k[c, j] * q[c, i].
        # (Leading-dim contraction folds into the MXU weight load; no vxpose.)
        st = lax.dot_general(k, q, (((0,), (0,)), ((), ())),
                             preferred_element_type=jnp.float32)     # (Tk, Tq)
        if neg_mask is not None:
            st = st + neg_mask
        # Softmax over the key axis (axis 0), statistics in f32.
        st = st - jnp.max(st, axis=0, keepdims=True)
        p = jnp.exp(st)
        p = p * pl.reciprocal(jnp.sum(p, axis=0, keepdims=True), approx=True)
        # out[c, i] = sum_j v[c, j] * p[j, i]  -> plain matmul, no transposes.
        return jnp.dot(v, p.astype(jnp.bfloat16),
                       preferred_element_type=jnp.float32)            # (C, T)

    cxr_ref[0] = attend(q_l, k_r, xr).astype(cxr_ref.dtype)   # right -> left
    enh_ref[0] = attend(q_r, k_l, xl).astype(enh_ref.dtype)   # left  -> right


def _choose_block_rows(b, h, w, target_t=512):
    """Image rows per grid step.

    T = th*w must be a multiple of 128 (lane-dense blocks) unless th == h
    (block equals the full flattened spatial dim).  Target T ~ 512: big enough
    to amortize per-step overhead, small enough that the (T, T) block-diagonal
    score matrix stays VMEM-friendly on v7x (64 MiB) and the TH-x wasted exps
    stay cheap on v5e's single EUP.
    """
    if w % 128 == 0:
        th = 1                      # per-row attention: no mask, no waste
    else:
        cands = [t for t in range(1, h + 1)
                 if h % t == 0 and (t == h or (t * w) % 128 == 0)]
        good = [t for t in cands if t * w <= target_t]
        th = max(good) if good else min(cands, key=lambda t: t * w)
    # Keep >=2 grid steps on the parallel axes so v7x's 2 TensorCores both work.
    if b == 1 and th == h and h > 1:
        smaller = [t for t in range(1, h)
                   if h % t == 0 and (t * w) % 128 == 0 and t * w <= target_t]
        if smaller:
            th = max(smaller)
    return th


def _vmem_limit_bytes():
    """Generation-aware VMEM cap: ~75% of physical, never above 96 MiB."""
    try:
        cap = pltpu.get_tpu_info().vmem_capacity_bytes
    except Exception:
        cap = 64 * 1024 * 1024      # conservative (v7x-sized) fallback
    return min(int(cap * 3 // 4), 96 * 1024 * 1024)


def pab_forward(fea_left, fea_right, wq, bq, wk, bk):
    """PAB forward.  Inputs/outputs are NCHW, like the PyTorch module."""
    b, c, h, w = fea_left.shape
    th = _choose_block_rows(b, h, w)
    t = th * w
    out_dtype = fea_left.dtype

    # Free, contiguous reshapes -- no HBM transposes.
    xl = fea_left.reshape(b, c, h * w)
    xr = fea_right.reshape(b, c, h * w)

    # Stack query & key projections into one (2C, C) weight; fold the 1/c
    # softmax scale into the query half.  Weights bf16 (MXU), biases f32.
    w_stack = jnp.concatenate([wq / c, wk], axis=0).astype(jnp.bfloat16)
    b_stack = jnp.concatenate([bq / c, bk], axis=0).reshape(2 * c, 1)
    b_stack = b_stack.astype(jnp.float32)

    kernel = functools.partial(_pab_kernel, block_rows=th, width=w)

    slab_spec = pl.BlockSpec((1, c, t), lambda bi, hi: (bi, 0, hi))
    wspec = pl.BlockSpec((2 * c, c), lambda bi, hi: (0, 0))
    bspec = pl.BlockSpec((2 * c, 1), lambda bi, hi: (0, 0))

    out_shape = (jax.ShapeDtypeStruct((b, c, h * w), out_dtype),
                 jax.ShapeDtypeStruct((b, c, h * w), out_dtype))

    cxr_flat, enh_flat = pl.pallas_call(
        kernel,
        out_shape=out_shape,
        grid=(b, h // th),
        in_specs=[slab_spec, slab_spec, wspec, bspec],
        out_specs=[slab_spec, slab_spec],
        compiler_params=pltpu.CompilerParams(
            dimension_semantics=("parallel", "parallel"),
            vmem_limit_bytes=_vmem_limit_bytes()),
    )(xl, xr, w_stack, b_stack)

    return cxr_flat.reshape(b, c, h, w), enh_flat.reshape(b, c, h, w)


def _fuse_conv_bn(conv_w, conv_b, gamma, beta, mean, var, eps=1e-5):
    """Fuse 1x1 Conv2d + eval-mode BatchNorm2d into (W_eff, b_eff)."""
    scale = gamma / jnp.sqrt(var + eps)                 # (C,)
    w_eff = conv_w * scale[:, None]                     # (C_out, C_in)
    b_eff = (conv_b - mean) * scale + beta              # (C,)
    return w_eff, b_eff


def _pab_reference(xl_nchw, xr_nchw, wq, bq, wk, bk):
    """Pure-JAX reference mirroring the PyTorch forward (fused conv+BN)."""
    b, c, h, w = xl_nchw.shape
    hp = lax.Precision.HIGHEST

    def conv1x1(x, W, bias):
        return (jnp.einsum('bchw,oc->bohw', x, W, precision=hp)
                + bias[None, :, None, None])

    def one_dir(x_q_feat, x_kv_feat):
        Q = jnp.transpose(conv1x1(x_q_feat, wq, bq), (0, 2, 3, 1))   # B,H,W,C
        K = jnp.transpose(conv1x1(x_kv_feat, wk, bk), (0, 2, 1, 3))  # B,H,C,W
        cost = jnp.matmul(Q, K, precision=hp) / c
        cost = jax.nn.softmax(cost, axis=-1)
        out = jnp.matmul(cost, jnp.transpose(x_kv_feat, (0, 2, 3, 1)),
                         precision=hp)
        return jnp.transpose(out, (0, 3, 1, 2))

    return one_dir(xl_nchw, xr_nchw), one_dir(xr_nchw, xl_nchw)


if __name__ == "__main__":
    B, C, H, W = 2, 32, 8, 16
    key = jax.random.PRNGKey(0)
    keys = jax.random.split(key, 10)

    fea_left = jax.random.normal(keys[0], (B, C, H, W), jnp.float32)
    fea_right = jax.random.normal(keys[1], (B, C, H, W), jnp.float32)

    # Deterministic parameter init (shapes from PAB.__init__ with channels=C).
    conv_wq = 0.1 * jax.random.normal(keys[2], (C, C), jnp.float32)  # 1x1 conv
    conv_bq = 0.1 * jax.random.normal(keys[3], (C,), jnp.float32)
    conv_wk = 0.1 * jax.random.normal(keys[4], (C, C), jnp.float32)
    conv_bk = 0.1 * jax.random.normal(keys[5], (C,), jnp.float32)
    # BatchNorm params / running stats (eval mode).
    gamma_q = 1.0 + 0.05 * jax.random.normal(keys[6], (C,), jnp.float32)
    beta_q = 0.05 * jax.random.normal(keys[7], (C,), jnp.float32)
    gamma_k = 1.0 + 0.05 * jax.random.normal(keys[8], (C,), jnp.float32)
    beta_k = 0.05 * jax.random.normal(keys[9], (C,), jnp.float32)
    mean_q = jnp.zeros((C,), jnp.float32)
    var_q = jnp.ones((C,), jnp.float32)
    mean_k = jnp.zeros((C,), jnp.float32)
    var_k = jnp.ones((C,), jnp.float32)

    wq, bq = _fuse_conv_bn(conv_wq, conv_bq, gamma_q, beta_q, mean_q, var_q)
    wk, bk = _fuse_conv_bn(conv_wk, conv_bk, gamma_k, beta_k, mean_k, var_k)

    cxr, enh = jax.jit(pab_forward)(fea_left, fea_right, wq, bq, wk, bk)
    jax.block_until_ready((cxr, enh))

    cxr_ref, enh_ref = _pab_reference(fea_left, fea_right, wq, bq, wk, bk)
    assert cxr.shape == (B, C, H, W) and enh.shape == (B, C, H, W)
    # Tolerance covers bf16 MXU operands (f32 accumulation / softmax stats)
    # and the approximate EUP reciprocal in the softmax denominator.
    assert jnp.allclose(cxr, cxr_ref, atol=2e-2, rtol=2e-2)
    assert jnp.allclose(enh, enh_ref, atol=2e-2, rtol=2e-2)

    print("KERNEL_OK")
</pallas_src>

<mosaic_0001>
module attributes {stable_mosaic.version = 11 : i64} {
  func.func @_pab_kernel(%arg0: i32, %arg1: i32, %arg2: memref<1x32x128xf32, #tpu.memory_space<vmem>>, %arg3: memref<1x32x128xf32, #tpu.memory_space<vmem>>, %arg4: memref<64x32xbf16, #tpu.memory_space<vmem>>, %arg5: memref<64x1xf32, #tpu.memory_space<vmem>>, %arg6: memref<1x32x128xf32, #tpu.memory_space<vmem>>, %arg7: memref<1x32x128xf32, #tpu.memory_space<vmem>>) attributes {dimension_semantics = [#tpu.dimension_semantics<parallel>, #tpu.dimension_semantics<parallel>], iteration_bounds = array<i64: 2, 1>, scalar_prefetch = 0 : i64, scratch_operands = 0 : i64, tpu.core_type = #tpu.core_type<tc>, window_params = [{transform_indices = @transform_0, window_bounds = array<i64: 1, 32, 128>}, {transform_indices = @transform_1, window_bounds = array<i64: 1, 32, 128>}, {pipeline_mode = #tpu.pipeline_mode<synchronous>, transform_indices = @transform_2, window_bounds = array<i64: 64, 32>}, {pipeline_mode = #tpu.pipeline_mode<synchronous>, transform_indices = @transform_3, window_bounds = array<i64: 64, 1>}, {transform_indices = @transform_4, window_bounds = array<i64: 1, 32, 128>}, {transform_indices = @transform_5, window_bounds = array<i64: 1, 32, 128>}]} {
    %c0 = arith.constant 0 : index
    %c0_0 = arith.constant 0 : index
    %c0_1 = arith.constant 0 : index
    %0 = vector.load %arg2[%c0, %c0_0, %c0_1] : memref<1x32x128xf32, #tpu.memory_space<vmem>>, vector<1x32x128xf32>
    %1 = vector.shape_cast %0 : vector<1x32x128xf32> to vector<32x128xf32>
    %2 = arith.truncf %1 : vector<32x128xf32> to vector<32x128xbf16>
    %c0_2 = arith.constant 0 : index
    %c0_3 = arith.constant 0 : index
    %c0_4 = arith.constant 0 : index
    %3 = vector.load %arg3[%c0_2, %c0_3, %c0_4] : memref<1x32x128xf32, #tpu.memory_space<vmem>>, vector<1x32x128xf32>
    %4 = vector.shape_cast %3 : vector<1x32x128xf32> to vector<32x128xf32>
    %5 = arith.truncf %4 : vector<32x128xf32> to vector<32x128xbf16>
    %c0_5 = arith.constant 0 : index
    %c0_6 = arith.constant 0 : index
    %6 = vector.load %arg4[%c0_5, %c0_6] : memref<64x32xbf16, #tpu.memory_space<vmem>>, vector<64x32xbf16>
    %c0_7 = arith.constant 0 : index
    %c0_8 = arith.constant 0 : index
    %7 = vector.load %arg5[%c0_7, %c0_8] : memref<64x1xf32, #tpu.memory_space<vmem>>, vector<64x1xf32>
    %cst = arith.constant dense<0.000000e+00> : vector<64x128xf32>
    %8 = tpu.matmul %6, %2, %cst {dimension_numbers = #tpu.dot_dimension_numbers<[1], [0], [0], [1], [0, 0, 1, 1], [], []>} : vector<64x32xbf16>, vector<32x128xbf16>, vector<64x128xf32> -> vector<64x128xf32>
    %9 = vector.broadcast %7 : vector<64x1xf32> to vector<64x128xf32>
    %10 = arith.addf %8, %9 : vector<64x128xf32>
    %cst_9 = arith.constant dense<0.000000e+00> : vector<64x128xf32>
    %11 = tpu.matmul %6, %5, %cst_9 {dimension_numbers = #tpu.dot_dimension_numbers<[1], [0], [0], [1], [0, 0, 1, 1], [], []>} : vector<64x32xbf16>, vector<32x128xbf16>, vector<64x128xf32> -> vector<64x128xf32>
    %12 = vector.broadcast %7 : vector<64x1xf32> to vector<64x128xf32>
    %13 = arith.addf %11, %12 : vector<64x128xf32>
    %14 = vector.extract_strided_slice %10 {offsets = [0, 0], sizes = [32, 128], strides = [1, 1]} : vector<64x128xf32> to vector<32x128xf32>
    %15 = arith.truncf %14 : vector<32x128xf32> to vector<32x128xbf16>
    %16 = vector.extract_strided_slice %10 {offsets = [32, 0], sizes = [32, 128], strides = [1, 1]} : vector<64x128xf32> to vector<32x128xf32>
    %17 = arith.truncf %16 : vector<32x128xf32> to vector<32x128xbf16>
    %18 = vector.extract_strided_slice %13 {offsets = [0, 0], sizes = [32, 128], strides = [1, 1]} : vector<64x128xf32> to vector<32x128xf32>
    %19 = arith.truncf %18 : vector<32x128xf32> to vector<32x128xbf16>
    %20 = vector.extract_strided_slice %13 {offsets = [32, 0], sizes = [32, 128], strides = [1, 1]} : vector<64x128xf32> to vector<32x128xf32>
    %21 = arith.truncf %20 : vector<32x128xf32> to vector<32x128xbf16>
    %22 = tpu.iota {dimensions = array<i32: 0>} : vector<128x128xi32>
    %23 = arith.sitofp %22 : vector<128x128xi32> to vector<128x128xf32>
    %24 = tpu.iota {dimensions = array<i32: 1>} : vector<128x128xi32>
    %25 = arith.sitofp %24 : vector<128x128xi32> to vector<128x128xf32>
    %cst_10 = arith.constant 5.000000e-01 : f32
    %26 = vector.broadcast %cst_10 : f32 to vector<128x128xf32>
    %27 = arith.addf %23, %26 : vector<128x128xf32>
    %cst_11 = arith.constant 6.250000e-02 : f32
    %28 = vector.broadcast %cst_11 : f32 to vector<128x128xf32>
    %29 = arith.mulf %27, %28 : vector<128x128xf32>
    %30 = math.floor %29 : vector<128x128xf32>
    %cst_12 = arith.constant 5.000000e-01 : f32
    %31 = vector.broadcast %cst_12 : f32 to vector<128x128xf32>
    %32 = arith.addf %25, %31 : vector<128x128xf32>
    %cst_13 = arith.constant 6.250000e-02 : f32
    %33 = vector.broadcast %cst_13 : f32 to vector<128x128xf32>
    %34 = arith.mulf %32, %33 : vector<128x128xf32>
    %35 = math.floor %34 : vector<128x128xf32>
    %36 = arith.cmpf oeq, %30, %35 : vector<128x128xf32>
    %cst_14 = arith.constant 0.000000e+00 : f32
    %cst_15 = arith.constant -1.000000e+30 : f32
    %37 = vector.broadcast %cst_14 : f32 to vector<128x128xf32>
    %38 = vector.broadcast %cst_15 : f32 to vector<128x128xf32>
    %39 = arith.select %36, %37, %38 : vector<128x128xi1>, vector<128x128xf32>
    %cst_16 = arith.constant dense<0.000000e+00> : vector<128x128xf32>
    %40 = tpu.matmul %21, %15, %cst_16 {dimension_numbers = #tpu.dot_dimension_numbers<[0], [0], [1], [1], [0, 1, 1, 1], [], []>} : vector<32x128xbf16>, vector<32x128xbf16>, vector<128x128xf32> -> vector<128x128xf32>
    %41 = arith.addf %40, %39 : vector<128x128xf32>
    %cst_17 = arith.constant dense<0xFF800000> : vector<128xf32>
    %42 = vector.multi_reduction <maximumf>, %41, %cst_17 [0] : vector<128x128xf32> to vector<128xf32>
    %43 = vector.shape_cast %42 : vector<128xf32> to vector<1x128xf32>
    %44 = vector.broadcast %43 : vector<1x128xf32> to vector<128x128xf32>
    %45 = arith.subf %41, %44 : vector<128x128xf32>
    %46 = math.exp %45 : vector<128x128xf32>
    %cst_18 = arith.constant dense<0.000000e+00> : vector<128xf32>
    %47 = vector.multi_reduction <add>, %46, %cst_18 [0] : vector<128x128xf32> to vector<128xf32>
    %48 = vector.shape_cast %47 : vector<128xf32> to vector<1x128xf32>
    %49 = tpu.reciprocal %48 {approx = true} : vector<1x128xf32> -> vector<1x128xf32>
    %50 = vector.broadcast %49 : vector<1x128xf32> to vector<128x128xf32>
    %51 = arith.mulf %46, %50 : vector<128x128xf32>
    %52 = arith.truncf %51 : vector<128x128xf32> to vector<128x128xbf16>
    %cst_19 = arith.constant dense<0.000000e+00> : vector<32x128xf32>
    %53 = tpu.matmul %5, %52, %cst_19 {dimension_numbers = #tpu.dot_dimension_numbers<[1], [0], [0], [1], [0, 0, 1, 1], [], []>} : vector<32x128xbf16>, vector<128x128xbf16>, vector<32x128xf32> -> vector<32x128xf32>
    %c0_20 = arith.constant 0 : index
    %c0_21 = arith.constant 0 : index
    %c0_22 = arith.constant 0 : index
    %54 = vector.load %arg6[%c0_20, %c0_21, %c0_22] : memref<1x32x128xf32, #tpu.memory_space<vmem>>, vector<1x32x128xf32>
    %55 = vector.shape_cast %54 : vector<1x32x128xf32> to vector<32x128xf32>
    %56 = vector.shape_cast %53 : vector<32x128xf32> to vector<1x32x128xf32>
    tpu.vector_store %arg6[%c0_20, %c0_21, %c0_22], %56 {strides = array<i32>} : memref<1x32x128xf32, #tpu.memory_space<vmem>>, vector<1x32x128xf32>,
    %cst_23 = arith.constant dense<0.000000e+00> : vector<128x128xf32>
    %57 = tpu.matmul %17, %19, %cst_23 {dimension_numbers = #tpu.dot_dimension_numbers<[0], [0], [1], [1], [0, 1, 1, 1], [], []>} : vector<32x128xbf16>, vector<32x128xbf16>, vector<128x128xf32> -> vector<128x128xf32>
    %58 = arith.addf %57, %39 : vector<128x128xf32>
    %cst_24 = arith.constant dense<0xFF800000> : vector<128xf32>
    %59 = vector.multi_reduction <maximumf>, %58, %cst_24 [0] : vector<128x128xf32> to vector<128xf32>
    %60 = vector.shape_cast %59 : vector<128xf32> to vector<1x128xf32>
    %61 = vector.broadcast %60 : vector<1x128xf32> to vector<128x128xf32>
    %62 = arith.subf %58, %61 : vector<128x128xf32>
    %63 = math.exp %62 : vector<128x128xf32>
    %cst_25 = arith.constant dense<0.000000e+00> : vector<128xf32>
    %64 = vector.multi_reduction <add>, %63, %cst_25 [0] : vector<128x128xf32> to vector<128xf32>
    %65 = vector.shape_cast %64 : vector<128xf32> to vector<1x128xf32>
    %66 = tpu.reciprocal %65 {approx = true} : vector<1x128xf32> -> vector<1x128xf32>
    %67 = vector.broadcast %66 : vector<1x128xf32> to vector<128x128xf32>
    %68 = arith.mulf %63, %67 : vector<128x128xf32>
    %69 = arith.truncf %68 : vector<128x128xf32> to vector<128x128xbf16>
    %cst_26 = arith.constant dense<0.000000e+00> : vector<32x128xf32>
    %70 = tpu.matmul %2, %69, %cst_26 {dimension_numbers = #tpu.dot_dimension_numbers<[1], [0], [0], [1], [0, 0, 1, 1], [], []>} : vector<32x128xbf16>, vector<128x128xbf16>, vector<32x128xf32> -> vector<32x128xf32>
    %c0_27 = arith.constant 0 : index
    %c0_28 = arith.constant 0 : index
    %c0_29 = arith.constant 0 : index
    %71 = vector.load %arg7[%c0_27, %c0_28, %c0_29] : memref<1x32x128xf32, #tpu.memory_space<vmem>>, vector<1x32x128xf32>
    %72 = vector.shape_cast %71 : vector<1x32x128xf32> to vector<32x128xf32>
    %73 = vector.shape_cast %70 : vector<32x128xf32> to vector<1x32x128xf32>
    tpu.vector_store %arg7[%c0_27, %c0_28, %c0_29], %73 {strides = array<i32>} : memref<1x32x128xf32, #tpu.memory_space<vmem>>, vector<1x32x128xf32>,
    return
  }
  func.func @transform_0(%arg0: i32, %arg1: i32) -> (i32, i32, i32) {
    %c0_i32 = arith.constant 0 : i32
    %c0_i32_0 = arith.constant 0 : i32
    return %arg0, %c0_i32, %arg1 : i32, i32, i32
  }
  func.func @transform_1(%arg0: i32, %arg1: i32) -> (i32, i32, i32) {
    %c0_i32 = arith.constant 0 : i32
    %c0_i32_0 = arith.constant 0 : i32
    return %arg0, %c0_i32, %arg1 : i32, i32, i32
  }
  func.func @transform_2(%arg0: i32, %arg1: i32) -> (i32, i32) {
    %c0_i32 = arith.constant 0 : i32
    %c0_i32_0 = arith.constant 0 : i32
    %c0_i32_1 = arith.constant 0 : i32
    return %c0_i32, %c0_i32_0 : i32, i32
  }
  func.func @transform_3(%arg0: i32, %arg1: i32) -> (i32, i32) {
    %c0_i32 = arith.constant 0 : i32
    %c0_i32_0 = arith.constant 0 : i32
    %c0_i32_1 = arith.constant 0 : i32
    return %c0_i32, %c0_i32_0 : i32, i32
  }
  func.func @transform_4(%arg0: i32, %arg1: i32) -> (i32, i32, i32) {
    %c0_i32 = arith.constant 0 : i32
    %c0_i32_0 = arith.constant 0 : i32
    return %arg0, %c0_i32, %arg1 : i32, i32, i32
  }
  func.func @transform_5(%arg0: i32, %arg1: i32) -> (i32, i32, i32) {
    %c0_i32 = arith.constant 0 : i32
    %c0_i32_0 = arith.constant 0 : i32
    return %arg0, %c0_i32, %arg1 : i32, i32, i32
  }
}

</mosaic_0001>

<llo_original>
// kernel: pab_forward.1
$region0: #{pab_forward.1}
  #allocation0 [shape = 'u32[]', space=smem, size = 0x4, offset = 0x4, fixed_abs, tag = 'smem constant byte address 0x4 - core index']
  #allocation1 [shape = 'u32[72,128]{1,0:T(1,128)}', space=vmem, size = 0x9000, scoped, tag = 'internal scratch']
  %s0 = inlined_call_operand.vmem [shape: f32[2,32,128], index: 0, kind: input, shape index: {}]
  %s1 = inlined_call_operand.vmem [shape: f32[2,32,128], index: 1, kind: input, shape index: {}]
  %s2 = inlined_call_operand.vmem [shape: bf16[64,32], index: 2, kind: input, shape index: {}]
  %s3 = inlined_call_operand.vmem [shape: f32[64,1], index: 3, kind: input, shape index: {}]
  %s4 = inlined_call_operand.vmem [shape: f32[2,32,128], index: 4, kind: output, shape index: {0}]
  %s5 = inlined_call_operand.vmem [shape: f32[2,32,128], index: 5, kind: output, shape index: {1}]
  %6 = xla_tuple %s4, %s5
  %s7 = sld [smem:[#allocation0]]
  $region57: #{pab_forward.1} parent=0
    _
  %s9 = ssub.s32 1, %s7
  %s10 = scalar_select 0, %s9, %s7
  loop: start=0, step=1, limit=4
  $region2: #{pab_forward.1} parent=0 // loop_pre_header
    _
  $region3: #{pab_forward.1} parent=0 // loop_header
    %s12 = sphi 0, %s16
    %p13 = scmp.ge.s32.totalorder %s12, 4
    %s19 = sphi 0, %s31
    %s20 = sphi 0, %s27
    %s21 = sphi 0, %s19
    %s22 = sphi 0, %s20
    %s23 = sphi 0, %s21
    %s24 = sphi 0, %s22
    %s36 = sphi 0, %s38
    %s39 = sphi 0, %s36
    %s40 = sphi 0, %s39
    %s56 = sphi 0, %s40
    %s64 = sphi 0, %s66
    %s67 = sphi 0, %s64
    %s68 = sphi 0, %s67
    %s84 = sphi 0, %s68
    %s88 = sphi 0, %s88
    %s90 = sphi 0, %s88
    %s91 = sphi 0, %s90
    %s105 = sphi 0, %s91
    %s109 = sphi 0, %s109
    %s111 = sphi 0, %s109
    %s112 = sphi 0, %s111
    %s126 = sphi 0, %s112
    %s134 = sphi 0, %s136
    %s137 = sphi 0, %s134
    %s138 = sphi 0, %s137
    %s154 = sphi 0, %s138
    %s162 = sphi 0, %s164
    %s165 = sphi 0, %s162
    %s166 = sphi 0, %s165
    %s182 = sphi 0, %s166
  $region4: #{pab_forward.1} parent=0 // loop_header_branch
    %15 = sbr.rel (%p13) target = $region8
  $region5: #{pab_forward.1} parent=0 // loop_body
    %s17 = ssub.s32 %s12, 1
    %s18 = ssub.s32 %s12, 2
    %s25 = sadd.s32 1, %s20
    %p26 = scmp.ge.s32.totalorder %s25, 1
    %s27 = scalar_select %p26, 0, %s25
    %s28 = sadd.s32 1, %s19
    %s29 = scalar_select %p26, %s28, %s19
    %p30 = scmp.ge.s32.totalorder %s29, 2
    %s31 = scalar_select %p30, 0, %s29
    %s32 = ssub.s32 %s19, %s31
    %s33 = ssub.s32 %s20, %s27
    %s34 = sor.u32 %s32, %s33
    %p35 = scmp.eq.s32.totalorder %s34, 0
    %s37 = sadd.s32 %s36, 1
    %s38 = scalar_select %p35, %s36, %s37
    %p41 = pneg %p35
    %p42 = scmp.eq.s32.totalorder %s12, 1
    %p43 = por %p41, %p42
    %p44 = scmp.ne.s32.totalorder %s36, %s39
    %p45 = scmp.eq.s32.totalorder %s12, 0
    %p46 = por %p44, %p45
    %p47 = scmp.ne.s32.totalorder %s36, %s39
    %p48 = scmp.eq.s32.totalorder %s17, 1
    %p49 = por %p47, %p48
    %p50 = scmp.ne.s32.totalorder %s39, %s40
    %p51 = scmp.eq.s32.totalorder %s17, 0
    %p52 = por %p50, %p51
    %p53 = scmp.ne.s32.totalorder %s39, %s40
    %p54 = scmp.eq.s32.totalorder %s18, 1
    %p55 = por %p53, %p54
    %p57 = scmp.ne.s32.totalorder %s40, %s56
    %p58 = scmp.eq.s32.totalorder %s18, 0
    %p59 = por %p57, %p58
    %s60 = ssub.s32 %s19, %s31
    %s61 = ssub.s32 %s20, %s27
    %s62 = sor.u32 %s60, %s61
    %p63 = scmp.eq.s32.totalorder %s62, 0
    %s65 = sadd.s32 %s64, 1
    %s66 = scalar_select %p63, %s64, %s65
    %p69 = pneg %p63
    %p70 = scmp.eq.s32.totalorder %s12, 1
    %p71 = por %p69, %p70
    %p72 = scmp.ne.s32.totalorder %s64, %s67
    %p73 = scmp.eq.s32.totalorder %s12, 0
    %p74 = por %p72, %p73
    %p75 = scmp.ne.s32.totalorder %s64, %s67
    %p76 = scmp.eq.s32.totalorder %s17, 1
    %p77 = por %p75, %p76
    %p78 = scmp.ne.s32.totalorder %s67, %s68
    %p79 = scmp.eq.s32.totalorder %s17, 0
    %p80 = por %p78, %p79
    %p81 = scmp.ne.s32.totalorder %s67, %s68
    %p82 = scmp.eq.s32.totalorder %s18, 1
    %p83 = por %p81, %p82
    %p85 = scmp.ne.s32.totalorder %s68, %s84
    %p86 = scmp.eq.s32.totalorder %s18, 0
    %p87 = por %p85, %p86
    %s89 = sadd.s32 %s88, 1
    %p92 = scmp.eq.s32.totalorder %s12, 1
    %p93 = scmp.ne.s32.totalorder %s88, %s90
    %p94 = scmp.eq.s32.totalorder %s12, 0
    %p95 = por %p93, %p94
    %p96 = scmp.ne.s32.totalorder %s88, %s90
    %p97 = scmp.eq.s32.totalorder %s17, 1
    %p98 = por %p96, %p97
    %p99 = scmp.ne.s32.totalorder %s90, %s91
    %p100 = scmp.eq.s32.totalorder %s17, 0
    %p101 = por %p99, %p100
    %p102 = scmp.ne.s32.totalorder %s90, %s91
    %p103 = scmp.eq.s32.totalorder %s18, 1
    %p104 = por %p102, %p103
    %p106 = scmp.ne.s32.totalorder %s91, %s105
    %p107 = scmp.eq.s32.totalorder %s18, 0
    %p108 = por %p106, %p107
    %s110 = sadd.s32 %s109, 1
    %p113 = scmp.eq.s32.totalorder %s12, 1
    %p114 = scmp.ne.s32.totalorder %s109, %s111
    %p115 = scmp.eq.s32.totalorder %s12, 0
    %p116 = por %p114, %p115
    %p117 = scmp.ne.s32.totalorder %s109, %s111
    %p118 = scmp.eq.s32.totalorder %s17, 1
    %p119 = por %p117, %p118
    %p120 = scmp.ne.s32.totalorder %s111, %s112
    %p121 = scmp.eq.s32.totalorder %s17, 0
    %p122 = por %p120, %p121
    %p123 = scmp.ne.s32.totalorder %s111, %s112
    %p124 = scmp.eq.s32.totalorder %s18, 1
    %p125 = por %p123, %p124
    %p127 = scmp.ne.s32.totalorder %s112, %s126
    %p128 = scmp.eq.s32.totalorder %s18, 0
    %p129 = por %p127, %p128
    %s130 = ssub.s32 %s19, %s31
    %s131 = ssub.s32 %s20, %s27
    %s132 = sor.u32 %s130, %s131
    %p133 = scmp.eq.s32.totalorder %s132, 0
    %s135 = sadd.s32 %s134, 1
    %s136 = scalar_select %p133, %s134, %s135
    %p139 = pneg %p133
    %p140 = scmp.eq.s32.totalorder %s12, 1
    %p141 = por %p139, %p140
    %p142 = scmp.ne.s32.totalorder %s134, %s137
    %p143 = scmp.eq.s32.totalorder %s12, 0
    %p144 = por %p142, %p143
    %p145 = scmp.ne.s32.totalorder %s134, %s137
    %p146 = scmp.eq.s32.totalorder %s17, 1
    %p147 = por %p145, %p146
    %p148 = scmp.ne.s32.totalorder %s137, %s138
    %p149 = scmp.eq.s32.totalorder %s17, 0
    %p150 = por %p148, %p149
    %p151 = scmp.ne.s32.totalorder %s137, %s138
    %p152 = scmp.eq.s32.totalorder %s18, 1
    %p153 = por %p151, %p152
    %p155 = scmp.ne.s32.totalorder %s138, %s154
    %p156 = scmp.eq.s32.totalorder %s18, 0
    %p157 = por %p155, %p156
    %s158 = ssub.s32 %s19, %s31
    %s159 = ssub.s32 %s20, %s27
    %s160 = sor.u32 %s158, %s159
    %p161 = scmp.eq.s32.totalorder %s160, 0
    %s163 = sadd.s32 %s162, 1
    %s164 = scalar_select %p161, %s162, %s163
    %p167 = pneg %p161
    %p168 = scmp.eq.s32.totalorder %s12, 1
    %p169 = por %p167, %p168
    %p170 = scmp.ne.s32.totalorder %s162, %s165
    %p171 = scmp.eq.s32.totalorder %s12, 0
    %p172 = por %p170, %p171
    %p173 = scmp.ne.s32.totalorder %s162, %s165
    %p174 = scmp.eq.s32.totalorder %s17, 1
    %p175 = por %p173, %p174
    %p176 = scmp.ne.s32.totalorder %s165, %s166
    %p177 = scmp.eq.s32.totalorder %s17, 0
    %p178 = por %p176, %p177
    %p179 = scmp.ne.s32.totalorder %s165, %s166
    %p180 = scmp.eq.s32.totalorder %s18, 1
    %p181 = por %p179, %p180
    %p183 = scmp.ne.s32.totalorder %s166, %s182
    %p184 = scmp.eq.s32.totalorder %s18, 0
    %p185 = por %p183, %p184
    %p186 = scmp.le.s32.totalorder 1, %s12
    %p187 = scmp.lt.s32.totalorder %s12, 3
    %p188 = pnand %p186, %p187
    %p189 = pneg %p188
    // Predicated region
    $region9: #{pab_forward.1} parent=5 // pred_check
      _
    $region10: #{pab_forward.1} parent=5 // pred_check_branch
      %191 = sbr.rel (%p188) target = $region12
    $region11: #{pab_forward.1} parent=5 // pred_region
      %s192 = ssub.s32 %s12, 1
      // Predicated region
      $region13: #{pab_forward.1} parent=11 // pred_check
        %p193 = pneg %p101
      $region14: #{pab_forward.1} parent=11 // pred_check_branch
        %195 = sbr.rel (%p193) target = $region16
      $region15: #{pab_forward.1} parent=11 // pred_region
        _
      $region16: #{pab_forward.1} parent=11 // pred_fallthru
        _
      // Predicated region
      $region17: #{pab_forward.1} parent=11 // pred_check
        %p196 = pneg %p122
      $region18: #{pab_forward.1} parent=11 // pred_check_branch
        %198 = sbr.rel (%p196) target = $region20
      $region19: #{pab_forward.1} parent=11 // pred_region
        _
      $region20: #{pab_forward.1} parent=11 // pred_fallthru
        _
    $region12: #{pab_forward.1} parent=5 // pred_fallthru
      _
    %p199 = scmp.lt.s32.totalorder %s12, 2
    // Predicated region
    $region21: #{pab_forward.1} parent=5 // pred_check
      %p200 = pneg %p199
    $region22: #{pab_forward.1} parent=5 // pred_check_branch
      %202 = sbr.rel (%p200) target = $region24
    $region23: #{pab_forward.1} parent=5 // pred_region
      // Predicated region
      $region25: #{pab_forward.1} parent=23 // pred_check
        %p203 = pneg %p46
      $region26: #{pab_forward.1} parent=23 // pred_check_branch
        %205 = sbr.rel (%p203) target = $region28
      $region27: #{pab_forward.1} parent=23 // pred_region
        %p206 = scmp.lt.s32.totalorder %s19, 1
        %s207 = scalar_select %p206, %s19, 1
        %p208 = scmp.lt.s32.totalorder %s20, 0
        %s209 = scalar_select %p208, %s20, 0
        %s210 = smul.addr %s207, 4
        %s211 = sadd.s32 %s209, %s210
        %s212 = smul.addr %s211, 8
        %s213 = scalar_lea.vmem %s0, %s212
      $region28: #{pab_forward.1} parent=23 // pred_fallthru
        _
      // Predicated region
      $region29: #{pab_forward.1} parent=23 // pred_check
        %p214 = pneg %p74
      $region30: #{pab_forward.1} parent=23 // pred_check_branch
        %216 = sbr.rel (%p214) target = $region32
      $region31: #{pab_forward.1} parent=23 // pred_region
        %p217 = scmp.lt.s32.totalorder %s19, 1
        %s218 = scalar_select %p217, %s19, 1
        %p219 = scmp.lt.s32.totalorder %s20, 0
        %s220 = scalar_select %p219, %s20, 0
        %s221 = smul.addr %s218, 4
        %s222 = sadd.s32 %s220, %s221
        %s223 = smul.addr %s222, 8
        %s224 = scalar_lea.vmem %s1, %s223
      $region32: #{pab_forward.1} parent=23 // pred_fallthru
        _
    $region24: #{pab_forward.1} parent=5 // pred_fallthru
      _
    %p225 = scmp.le.s32.totalorder 1, %s12
    %p226 = scmp.lt.s32.totalorder %s12, 3
    %p227 = pnand %p225, %p226
    %p228 = pneg %p227
    // Predicated region
    $region33: #{pab_forward.1} parent=5 // pred_check
      _
    $region34: #{pab_forward.1} parent=5 // pred_check_branch
      %230 = sbr.rel (%p227) target = $region36
    $region35: #{pab_forward.1} parent=5 // pred_region
      %s231 = ssub.s32 %s12, 1
      %p232 = scmp.lt.s32.totalorder %s21, 1
      %s233 = scalar_select %p232, %s21, 1
      %p234 = scmp.lt.s32.totalorder %s22, 0
      %s235 = scalar_select %p234, %s22, 0
      %s236 = smul.addr %s233, 4
      %s237 = sadd.s32 %s235, %s236
      %s238 = smul.addr %s237, 8
      %s239 = scalar_lea.vmem %s0, %s238
      %p240 = pneg %p52
      %p241 = pneg %p49
      %p242 = scmp.lt.s32.totalorder %s21, 1
      %s243 = scalar_select %p242, %s21, 1
      %p244 = scmp.lt.s32.totalorder %s22, 0
      %s245 = scalar_select %p244, %s22, 0
      %s246 = smul.addr %s243, 4
      %s247 = sadd.s32 %s245, %s246
      %s248 = smul.addr %s247, 8
      %s249 = scalar_lea.vmem %s1, %s248
      %p250 = pneg %p80
      %p251 = pneg %p77
      %p252 = pneg %p101
      %p253 = pneg %p98
      %p254 = pneg %p122
      %p255 = pneg %p119
      %p256 = pneg %p150
      %p257 = pneg %p147
      %p258 = scmp.lt.s32.totalorder %s21, 1
      %s259 = scalar_select %p258, %s21, 1
      %p260 = scmp.lt.s32.totalorder %s22, 0
      %s261 = scalar_select %p260, %s22, 0
      %s262 = smul.addr %s259, 4
      %s263 = sadd.s32 %s261, %s262
      %s264 = smul.addr %s263, 8
      %s265 = scalar_lea.vmem %s4, %s264
      %p266 = pneg %p178
      %p267 = pneg %p175
      %p268 = scmp.lt.s32.totalorder %s21, 1
      %s269 = scalar_select %p268, %s21, 1
      %p270 = scmp.lt.s32.totalorder %s22, 0
      %s271 = scalar_select %p270, %s22, 0
      %s272 = smul.addr %s269, 4
      %s273 = sadd.s32 %s271, %s272
      %s274 = smul.addr %s273, 8
      %s275 = scalar_lea.vmem %s5, %s274
      %p276 = scmp.lt.s32.totalorder %s21, 1
      %s277 = scalar_select %p276, %s21, 1
      %p278 = scmp.lt.s32.totalorder %s22, 0
      %s279 = scalar_select %p278, %s22, 0
      %s280 = smul.addr %s277, 4
      %s281 = sadd.s32 %s279, %s280
      %s282 = smul.addr %s281, 8
      %s283 = scalar_lea.vmem %s0, %s282
      %p284 = scmp.lt.s32.totalorder %s21, 1
      %s285 = scalar_select %p284, %s21, 1
      %p286 = scmp.lt.s32.totalorder %s22, 0
      %s287 = scalar_select %p286, %s22, 0
      %s288 = smul.addr %s285, 4
      %s289 = sadd.s32 %s287, %s288
      %s290 = smul.addr %s289, 8
      %s291 = scalar_lea.vmem %s1, %s290
      %p292 = scmp.lt.s32.totalorder %s21, 1
      %s293 = scalar_select %p292, %s21, 1
      %p294 = scmp.lt.s32.totalorder %s22, 0
      %s295 = scalar_select %p294, %s22, 0
      %s296 = smul.addr %s293, 4
      %s297 = sadd.s32 %s295, %s296
      %s298 = smul.addr %s297, 8
      %s299 = scalar_lea.vmem %s4, %s298
      %p300 = scmp.lt.s32.totalorder %s21, 1
      %s301 = scalar_select %p300, %s21, 1
      %p302 = scmp.lt.s32.totalorder %s22, 0
      %s303 = scalar_select %p302, %s22, 0
      %s304 = smul.addr %s301, 4
      %s305 = sadd.s32 %s303, %s304
      %s306 = smul.addr %s305, 8
      %s307 = scalar_lea.vmem %s5, %s306
      %v309 = vld [vmem:[%s283] sm:$0xff]
      %v310 = vld [vmem:[%s283 + $0x8] sm:$0xff]
      %v311 = vld [vmem:[%s283 + $0x10] sm:$0xff]
      %v312 = vld [vmem:[%s283 + $0x18] sm:$0xff]
      %v313 = vpack.c.bf16 %v310, %v309
      %v314 = vpack.c.bf16 %v312, %v311
      %v315 = vld [vmem:[%s291] sm:$0xff]
      %v316 = vld [vmem:[%s291 + $0x8] sm:$0xff]
      %v317 = vld [vmem:[%s291 + $0x10] sm:$0xff]
      %v318 = vld [vmem:[%s291 + $0x18] sm:$0xff]
      %v319 = vpack.c.bf16 %v316, %v315
      %v320 = vpack.c.bf16 %v318, %v317
      %v321 = vld [vmem:[%s2] sm:$0xf]
      %v322 = vld [vmem:[%s2 + $0x4] sm:$0xf]
      %v323 = vld [vmem:[%s2 + $0x8] sm:$0xf]
      %v324 = vld [vmem:[%s2 + $0xc] sm:$0xf]
      %v325 = vld [vmem:[%s2 + $0x10] sm:$0xf]
      %v326 = vld [vmem:[%s2 + $0x14] sm:$0xf]
      %v327 = vld [vmem:[%s2 + $0x18] sm:$0xf]
      %v328 = vld [vmem:[%s2 + $0x1c] sm:$0xf]
      %v329 = vld [vmem:[%s3] sm:$0xff]
      %v330 = vld [vmem:[%s3 + $0x8] sm:$0xff]
      %v331 = vld [vmem:[%s3 + $0x10] sm:$0xff]
      %v332 = vld [vmem:[%s3 + $0x18] sm:$0xff]
      %v333 = vld [vmem:[%s3 + $0x20] sm:$0xff]
      %v334 = vld [vmem:[%s3 + $0x28] sm:$0xff]
      %v335 = vld [vmem:[%s3 + $0x30] sm:$0xff]
      %v336 = vld [vmem:[%s3 + $0x38] sm:$0xff]
      %338 = vset.pattern.permute.xlu0 0
      %339 = vperm.xlu0 %338, %v329
      %v340 = vpop.permute.xlu0 %339
      %343 = vset.pattern.permute.xlu0 0
      %344 = vperm.xlu0 %343, %v330
      %v345 = vpop.permute.xlu0 %344
      %348 = vset.pattern.permute.xlu0 0
      %349 = vperm.xlu0 %348, %v331
      %v350 = vpop.permute.xlu0 %349
      %353 = vset.pattern.permute.xlu0 0
      %354 = vperm.xlu0 %353, %v332
      %v355 = vpop.permute.xlu0 %354
      %358 = vset.pattern.permute.xlu0 0
      %359 = vperm.xlu0 %358, %v333
      %v360 = vpop.permute.xlu0 %359
      %363 = vset.pattern.permute.xlu0 0
      %364 = vperm.xlu0 %363, %v334
      %v365 = vpop.permute.xlu0 %364
      %368 = vset.pattern.permute.xlu0 0
      %369 = vperm.xlu0 %368, %v335
      %v370 = vpop.permute.xlu0 %369
      %373 = vset.pattern.permute.xlu0 0
      %374 = vperm.xlu0 %373, %v336
      %v375 = vpop.permute.xlu0 %374
      %v385 = vunpack.c.l.b16 %v321
      %v386 = vunpack.c.l.b16 %v322
      %v387 = vunpack.c.l.b16 %v323
      %v388 = vunpack.c.l.b16 %v324
      %v389 = vunpack.c.l.b16 %v325
      %v390 = vunpack.c.l.b16 %v326
      %v391 = vunpack.c.l.b16 %v327
      %v392 = vunpack.c.l.b16 %v328
      %v393 = vpack.c.b16 %v386, %v385
      %v394 = vpack.c.b16 %v388, %v387
      %v395 = vpack.c.b16 %v390, %v389
      %v396 = vpack.c.b16 %v392, %v391
      %vm397 = vcmask 261120
      %v399 = vsel %vm397, %v393, 0
      %v402 = vsel %vm397, %v394, 0
      %v405 = vsel %vm397, %v395, 0
      %v408 = vsel %vm397, %v396, 0
      %410 = vmatpush.bf16.msra.mxu0 0
      %411 = vmatpush.bf16.msra.mxu0 0
      %412 = vmatpush.bf16.msra.mxu0 0
      %413 = vmatpush.bf16.msra.mxu0 0
      %414 = vmatpush.bf16.msra.mxu0 0
      %415 = vmatpush.bf16.msra.mxu0 0
      %416 = vmatpush.bf16.msra.mxu0 %v314
      %417 = vmatpush.bf16.msra.mxu0 %v313
      %418 = vmatmul.bf16.gmra.mxu0 %v399
      %v419 = vpop.f32.mrf.mxu0
      %v420 = vadd.f32 %v340, %v419
      %v421 = vpop.f32.mrf.mxu0
      %v422 = vadd.f32 %v345, %v421
      %423 = vmatmul.bf16.gmra.mxu0 %v402
      %v424 = vpop.f32.mrf.mxu0
      %v425 = vadd.f32 %v350, %v424
      %v426 = vpop.f32.mrf.mxu0
      %v427 = vadd.f32 %v355, %v426
      %428 = vmatmul.bf16.gmra.mxu0 %v405
      %v429 = vpop.f32.mrf.mxu0
      %v430 = vadd.f32 %v360, %v429
      %v431 = vpop.f32.mrf.mxu0
      %v432 = vadd.f32 %v365, %v431
      %433 = vmatmul.bf16.gmra.mxu0 %v408
      %v434 = vpop.f32.mrf.mxu0
      %v435 = vadd.f32 %v370, %v434
      %v436 = vpop.f32.mrf.mxu0
      %v437 = vadd.f32 %v375, %v436
      %438 = vdwg.mxu0
      %439 = vmatpush.bf16.msra.mxu0 0
      %440 = vmatpush.bf16.msra.mxu0 0
      %441 = vmatpush.bf16.msra.mxu0 0
      %442 = vmatpush.bf16.msra.mxu0 0
      %443 = vmatpush.bf16.msra.mxu0 0
      %444 = vmatpush.bf16.msra.mxu0 0
      %445 = vmatpush.bf16.msra.mxu0 %v320
      %446 = vmatpush.bf16.msra.mxu0 %v319
      %447 = vmatmul.bf16.gmra.mxu0 %v399
      %v448 = vpop.f32.mrf.mxu0
      %v449 = vadd.f32 %v340, %v448
      %v450 = vpop.f32.mrf.mxu0
      %v451 = vadd.f32 %v345, %v450
      %452 = vmatmul.bf16.gmra.mxu0 %v402
      %v453 = vpop.f32.mrf.mxu0
      %v454 = vadd.f32 %v350, %v453
      %v455 = vpop.f32.mrf.mxu0
      %v456 = vadd.f32 %v355, %v455
      %457 = vmatmul.bf16.gmra.mxu0 %v405
      %v458 = vpop.f32.mrf.mxu0
      %v459 = vadd.f32 %v360, %v458
      %v460 = vpop.f32.mrf.mxu0
      %v461 = vadd.f32 %v365, %v460
      %462 = vmatmul.bf16.gmra.mxu0 %v408
      %v463 = vpop.f32.mrf.mxu0
      %v464 = vadd.f32 %v370, %v463
      %v465 = vpop.f32.mrf.mxu0
      %v466 = vadd.f32 %v375, %v465
      %467 = vdwg.mxu0
      %v468 = vpack.c.bf16 %v422, %v420
      %v469 = vpack.c.bf16 %v427, %v425
      %v470 = vpack.c.bf16 %v432, %v430
      %v471 = vpack.c.bf16 %v437, %v435
      %v472 = vpack.c.bf16 %v451, %v449
      %v473 = vpack.c.bf16 %v456, %v454
      %v474 = vpack.c.bf16 %v461, %v459
      %v475 = vpack.c.bf16 %v466, %v464
      %v476 = vlaneseq
      %v477 = vshrl.u32 %v476, 7
      %v478 = vadd.s32 %v477, 8
      %v479 = vadd.s32 %v477, 16
      %v480 = vadd.s32 %v477, 24
      %v481 = vadd.s32 %v477, 32
      %v482 = vadd.s32 %v477, 40
      %v483 = vadd.s32 %v477, 48
      %v484 = vadd.s32 %v477, 56
      %v485 = vadd.s32 %v477, 64
      %v486 = vadd.s32 %v477, 72
      %v487 = vadd.s32 %v477, 80
      %v488 = vadd.s32 %v477, 88
      %v489 = vadd.s32 %v477, 96
      %v490 = vadd.s32 %v477, 104
      %v491 = vadd.s32 %v477, 112
      %v492 = vadd.s32 %v477, 120
      %v493 = vcvt.s32.f32 %v477
      %v494 = vcvt.s32.f32 %v478
      %v495 = vcvt.s32.f32 %v479
      %v496 = vcvt.s32.f32 %v480
      %v497 = vcvt.s32.f32 %v481
      %v498 = vcvt.s32.f32 %v482
      %v499 = vcvt.s32.f32 %v483
      %v500 = vcvt.s32.f32 %v484
      %v501 = vcvt.s32.f32 %v485
      %v502 = vcvt.s32.f32 %v486
      %v503 = vcvt.s32.f32 %v487
      %v504 = vcvt.s32.f32 %v488
      %v505 = vcvt.s32.f32 %v489
      %v506 = vcvt.s32.f32 %v490
      %v507 = vcvt.s32.f32 %v491
      %v508 = vcvt.s32.f32 %v492
      %v509 = vlaneseq
      %v510 = vand.u32 %v509, 127
      %v511 = vcvt.s32.f32 %v510
      %v512 = vadd.f32 %v493, 0.5
      %v513 = vadd.f32 %v494, 0.5
      %v514 = vadd.f32 %v495, 0.5
      %v515 = vadd.f32 %v496, 0.5
      %v516 = vadd.f32 %v497, 0.5
      %v517 = vadd.f32 %v498, 0.5
      %v518 = vadd.f32 %v499, 0.5
      %v519 = vadd.f32 %v500, 0.5
      %v520 = vadd.f32 %v501, 0.5
      %v521 = vadd.f32 %v502, 0.5
      %v522 = vadd.f32 %v503, 0.5
      %v523 = vadd.f32 %v504, 0.5
      %v524 = vadd.f32 %v505, 0.5
      %v525 = vadd.f32 %v506, 0.5
      %v526 = vadd.f32 %v507, 0.5
      %v527 = vadd.f32 %v508, 0.5
      %v528 = vmul.f32 %v512, 0.0625
      %v529 = vmul.f32 %v513, 0.0625
      %v530 = vmul.f32 %v514, 0.0625
      %v531 = vmul.f32 %v515, 0.0625
      %v532 = vmul.f32 %v516, 0.0625
      %v533 = vmul.f32 %v517, 0.0625
      %v534 = vmul.f32 %v518, 0.0625
      %v535 = vmul.f32 %v519, 0.0625
      %v536 = vmul.f32 %v520, 0.0625
      %v537 = vmul.f32 %v521, 0.0625
      %v538 = vmul.f32 %v522, 0.0625
      %v539 = vmul.f32 %v523, 0.0625
      %v540 = vmul.f32 %v524, 0.0625
      %v541 = vmul.f32 %v525, 0.0625
      %v542 = vmul.f32 %v526, 0.0625
      %v543 = vmul.f32 %v527, 0.0625
      %v544 = vfloor.f32 %v528
      %v545 = vfloor.f32 %v529
      %v546 = vfloor.f32 %v530
      %v547 = vfloor.f32 %v531
      %v548 = vfloor.f32 %v532
      %v549 = vfloor.f32 %v533
      %v550 = vfloor.f32 %v534
      %v551 = vfloor.f32 %v535
      %v552 = vfloor.f32 %v536
      %v553 = vfloor.f32 %v537
      %v554 = vfloor.f32 %v538
      %v555 = vfloor.f32 %v539
      %v556 = vfloor.f32 %v540
      %v557 = vfloor.f32 %v541
      %v558 = vfloor.f32 %v542
      %v559 = vfloor.f32 %v543
      %v560 = vadd.f32 %v511, 0.5
      %v561 = vmul.f32 %v560, 0.0625
      %v562 = vfloor.f32 %v561
      %vm563 = vcmp.eq.f32.partialorder %v544, %v562
      %vm564 = vcmp.eq.f32.partialorder %v545, %v562
      %vm565 = vcmp.eq.f32.partialorder %v546, %v562
      %vm566 = vcmp.eq.f32.partialorder %v547, %v562
      %vm567 = vcmp.eq.f32.partialorder %v548, %v562
      %vm568 = vcmp.eq.f32.partialorder %v549, %v562
      %vm569 = vcmp.eq.f32.partialorder %v550, %v562
      %vm570 = vcmp.eq.f32.partialorder %v551, %v562
      %vm571 = vcmp.eq.f32.partialorder %v552, %v562
      %vm572 = vcmp.eq.f32.partialorder %v553, %v562
      %vm573 = vcmp.eq.f32.partialorder %v554, %v562
      %vm574 = vcmp.eq.f32.partialorder %v555, %v562
      %vm575 = vcmp.eq.f32.partialorder %v556, %v562
      %vm576 = vcmp.eq.f32.partialorder %v557, %v562
      %vm577 = vcmp.eq.f32.partialorder %v558, %v562
      %vm578 = vcmp.eq.f32.partialorder %v559, %v562
      %v579 = vsel %vm563, 0.0, -1e+30
      %v580 = vsel %vm564, 0.0, -1e+30
      %v581 = vsel %vm565, 0.0, -1e+30
      %v582 = vsel %vm566, 0.0, -1e+30
      %v583 = vsel %vm567, 0.0, -1e+30
      %v584 = vsel %vm568, 0.0, -1e+30
      %v585 = vsel %vm569, 0.0, -1e+30
      %v586 = vsel %vm570, 0.0, -1e+30
      %v587 = vsel %vm571, 0.0, -1e+30
      %v588 = vsel %vm572, 0.0, -1e+30
      %v589 = vsel %vm573, 0.0, -1e+30
      %v590 = vsel %vm574, 0.0, -1e+30
      %v591 = vsel %vm575, 0.0, -1e+30
      %v592 = vsel %vm576, 0.0, -1e+30
      %v593 = vsel %vm577, 0.0, -1e+30
      %v594 = vsel %vm578, 0.0, -1e+30
      %595 = vxpose.xlu0.c.b16.start [1/8] %v474, 128
      %596 = vxpose.xlu0.c.b16.cont [2/8] %v475, 128
      %597 = vxpose.xlu0.c.b16.cont [3/8] 0, 128
      %598 = vxpose.xlu0.c.b16.cont [4/8] 0, 128
      %599 = vxpose.xlu0.c.b16.cont [5/8] 0, 128
      %600 = vxpose.xlu0.c.b16.cont [6/8] 0, 128
      %601 = vxpose.xlu0.c.b16.cont [7/8] 0, 128
      %602 = vxpose.xlu0.c.b16.end [8/8] 0, 128
      %v603 = vpop.trf.xlu0
      %v604 = vpop.trf.xlu0
      %v605 = vpop.trf.xlu0
      %v606 = vpop.trf.xlu0
      %v607 = vpop.trf.xlu0
      %v608 = vpop.trf.xlu0
      %v609 = vpop.trf.xlu0
      %v610 = vpop.trf.xlu0
      %v612 = vsel %vm397, %v603, 0
      %v615 = vsel %vm397, %v604, 0
      %v618 = vsel %vm397, %v605, 0
      %v621 = vsel %vm397, %v606, 0
      %v624 = vsel %vm397, %v607, 0
      %v627 = vsel %vm397, %v608, 0
      %v630 = vsel %vm397, %v609, 0
      %v633 = vsel %vm397, %v610, 0
      %635 = vmatpush.bf16.msra.mxu0 0
      %636 = vmatpush.bf16.msra.mxu0 0
      %637 = vmatpush.bf16.msra.mxu0 0
      %638 = vmatpush.bf16.msra.mxu0 0
      %639 = vmatpush.bf16.msra.mxu0 0
      %640 = vmatpush.bf16.msra.mxu0 0
      %641 = vmatpush.bf16.msra.mxu0 %v469
      %642 = vmatpush.bf16.msra.mxu0 %v468
      %643 = vmatmul.bf16.gmra.mxu0 %v612
      %v644 = vpop.f32.mrf.mxu0
      %v645 = vadd.f32 %v579, %v644
      %v646 = vpop.f32.mrf.mxu0
      %v647 = vadd.f32 %v580, %v646
      %648 = vmatmul.bf16.gmra.mxu0 %v615
      %v649 = vpop.f32.mrf.mxu0
      %v650 = vadd.f32 %v581, %v649
      %v651 = vpop.f32.mrf.mxu0
      %v652 = vadd.f32 %v582, %v651
      %653 = vmatmul.bf16.gmra.mxu0 %v618
      %v654 = vpop.f32.mrf.mxu0
      %v655 = vadd.f32 %v583, %v654
      %v656 = vpop.f32.mrf.mxu0
      %v657 = vadd.f32 %v584, %v656
      %658 = vmatmul.bf16.gmra.mxu0 %v621
      %v659 = vpop.f32.mrf.mxu0
      %v660 = vadd.f32 %v585, %v659
      %v661 = vpop.f32.mrf.mxu0
      %v662 = vadd.f32 %v586, %v661
      %663 = vmatmul.bf16.gmra.mxu0 %v624
      %v664 = vpop.f32.mrf.mxu0
      %v665 = vadd.f32 %v587, %v664
      %v666 = vpop.f32.mrf.mxu0
      %v667 = vadd.f32 %v588, %v666
      %668 = vmatmul.bf16.gmra.mxu0 %v627
      %v669 = vpop.f32.mrf.mxu0
      %v670 = vadd.f32 %v589, %v669
      %v671 = vpop.f32.mrf.mxu0
      %v672 = vadd.f32 %v590, %v671
      %673 = vmatmul.bf16.gmra.mxu0 %v630
      %v674 = vpop.f32.mrf.mxu0
      %v675 = vadd.f32 %v591, %v674
      %v676 = vpop.f32.mrf.mxu0
      %v677 = vadd.f32 %v592, %v676
      %678 = vmatmul.bf16.gmra.mxu0 %v633
      %v679 = vpop.f32.mrf.mxu0
      %v680 = vadd.f32 %v593, %v679
      %v681 = vpop.f32.mrf.mxu0
      %v682 = vadd.f32 %v594, %v681
      %683 = vdwg.mxu0
      %v684 = vmax.f32 %v645, %v655
      %v685 = vmax.f32 %v647, %v657
      %v686 = vmax.f32 %v650, %v660
      %v687 = vmax.f32 %v652, %v662
      %v688 = vmax.f32 %v684, %v665
      %v689 = vmax.f32 %v685, %v667
      %v690 = vmax.f32 %v686, %v670
      %v691 = vmax.f32 %v687, %v672
      %v692 = vmax.f32 %v688, %v675
      %v693 = vmax.f32 %v689, %v677
      %v694 = vmax.f32 %v690, %v680
      %v695 = vmax.f32 %v691, %v682
      %v696 = vmax.f32 %v692, %v693
      %v697 = vmax.f32 %v694, %v695
      %v698 = vmax.f32 %v696, %v697
      %v699 = vrot.slane %v698, 4
      %v700 = vmax.f32 %v698, %v699
      %v701 = vrot.slane %v700, 2
      %v702 = vmax.f32 %v700, %v701
      %v703 = vrot.slane %v702, 1
      %v704 = vmax.f32 %v702, %v703
      %v705 = vsub.f32 %v645, %v704
      %v706 = vsub.f32 %v647, %v704
      %v707 = vsub.f32 %v650, %v704
      %v708 = vsub.f32 %v652, %v704
      %v709 = vsub.f32 %v655, %v704
      %v710 = vsub.f32 %v657, %v704
      %v711 = vsub.f32 %v660, %v704
      %v712 = vsub.f32 %v662, %v704
      %v713 = vsub.f32 %v665, %v704
      %v714 = vsub.f32 %v667, %v704
      %v715 = vsub.f32 %v670, %v704
      %v716 = vsub.f32 %v672, %v704
      %v717 = vsub.f32 %v675, %v704
      %v718 = vsub.f32 %v677, %v704
      %v719 = vsub.f32 %v680, %v704
      %v720 = vsub.f32 %v682, %v704
      %v721 = vmul.f32 %v705, 1.442695
      %v722 = vpow.pop %v721
      %v723 = vmul.f32 %v706, 1.442695
      %v724 = vpow.pop %v723
      %v725 = vmul.f32 %v707, 1.442695
      %v726 = vpow.pop %v725
      %v727 = vmul.f32 %v708, 1.442695
      %v728 = vpow.pop %v727
      %v729 = vmul.f32 %v709, 1.442695
      %v730 = vpow.pop %v729
      %v731 = vmul.f32 %v710, 1.442695
      %v732 = vpow.pop %v731
      %v733 = vmul.f32 %v711, 1.442695
      %v734 = vpow.pop %v733
      %v735 = vmul.f32 %v712, 1.442695
      %v736 = vpow.pop %v735
      %v737 = vmul.f32 %v713, 1.442695
      %v738 = vpow.pop %v737
      %v739 = vmul.f32 %v714, 1.442695
      %v740 = vpow.pop %v739
      %v741 = vmul.f32 %v715, 1.442695
      %v742 = vpow.pop %v741
      %v743 = vmul.f32 %v716, 1.442695
      %v744 = vpow.pop %v743
      %v745 = vmul.f32 %v717, 1.442695
      %v746 = vpow.pop %v745
      %v747 = vmul.f32 %v718, 1.442695
      %v748 = vpow.pop %v747
      %v749 = vmul.f32 %v719, 1.442695
      %v750 = vpow.pop %v749
      %v751 = vmul.f32 %v720, 1.442695
      %v752 = vpow.pop %v751
      %v753 = vadd.f32 %v722, %v724
      %v754 = vadd.f32 %v753, %v726
      %v755 = vadd.f32 %v754, %v728
      %v756 = vadd.f32 %v755, %v730
      %v757 = vadd.f32 %v756, %v732
      %v758 = vadd.f32 %v757, %v734
      %v759 = vadd.f32 %v758, %v736
      %v760 = vadd.f32 %v759, %v738
      %v761 = vadd.f32 %v760, %v740
      %v762 = vadd.f32 %v761, %v742
      %v763 = vadd.f32 %v762, %v744
      %v764 = vadd.f32 %v763, %v746
      %v765 = vadd.f32 %v764, %v748
      %v766 = vadd.f32 %v765, %v750
      %v767 = vadd.f32 %v766, %v752
      %v768 = vrot.slane %v767, 4
      %v769 = vadd.f32 %v767, %v768
      %v770 = vrot.slane %v769, 2
      %v771 = vadd.f32 %v769, %v770
      %v772 = vrot.slane %v771, 1
      %v773 = vadd.f32 %v771, %v772
      %v774 = vrcp.pop %v773
      %v775 = vmul.f32 %v722, %v774
      %v776 = vmul.f32 %v724, %v774
      %v777 = vmul.f32 %v726, %v774
      %v778 = vmul.f32 %v728, %v774
      %v779 = vmul.f32 %v730, %v774
      %v780 = vmul.f32 %v732, %v774
      %v781 = vmul.f32 %v734, %v774
      %v782 = vmul.f32 %v736, %v774
      %v783 = vmul.f32 %v738, %v774
      %v784 = vmul.f32 %v740, %v774
      %v785 = vmul.f32 %v742, %v774
      %v786 = vmul.f32 %v744, %v774
      %v787 = vmul.f32 %v746, %v774
      %v788 = vmul.f32 %v748, %v774
      %v789 = vmul.f32 %v750, %v774
      %v790 = vmul.f32 %v752, %v774
      %v791 = vpack.c.bf16 %v776, %v775
      %v792 = vpack.c.bf16 %v778, %v777
      %v793 = vpack.c.bf16 %v780, %v779
      %v794 = vpack.c.bf16 %v782, %v781
      %v795 = vpack.c.bf16 %v784, %v783
      %v796 = vpack.c.bf16 %v786, %v785
      %v797 = vpack.c.bf16 %v788, %v787
      %v798 = vpack.c.bf16 %v790, %v789
      %799 = vmatpush.bf16.msra.mxu0 %v798
      %800 = vmatpush.bf16.msra.mxu0 %v797
      %801 = vmatpush.bf16.msra.mxu0 %v796
      %802 = vmatpush.bf16.msra.mxu0 %v795
      %803 = vmatpush.bf16.msra.mxu0 %v794
      %804 = vmatpush.bf16.msra.mxu0 %v793
      %805 = vmatpush.bf16.msra.mxu0 %v792
      %806 = vmatpush.bf16.msra.mxu0 %v791
      %807 = vmatmul.bf16.gmra.mxu0 %v319
      %v808 = vpop.f32.mrf.mxu0
      %v809 = vadd.f32 0.0, %v808
      %v810 = vpop.f32.mrf.mxu0
      %v811 = vadd.f32 0.0, %v810
      %812 = vmatmul.bf16.gmra.mxu0 %v320
      %v813 = vpop.f32.mrf.mxu0
      %v814 = vadd.f32 0.0, %v813
      %v815 = vpop.f32.mrf.mxu0
      %v816 = vadd.f32 0.0, %v815
      %817 = vdwg.mxu0
      %818 = vst [vmem:[%s299] sm:$0xff] %v809
      %819 = vst [vmem:[%s299 + $0x8] sm:$0xff] %v811
      %820 = vst [vmem:[%s299 + $0x10] sm:$0xff] %v814
      %821 = vst [vmem:[%s299 + $0x18] sm:$0xff] %v816
      %822 = vxpose.xlu0.c.b16.start [1/8] %v470, 128
      %823 = vxpose.xlu0.c.b16.cont [2/8] %v471, 128
      %824 = vxpose.xlu0.c.b16.cont [3/8] 0, 128
      %825 = vxpose.xlu0.c.b16.cont [4/8] 0, 128
      %826 = vxpose.xlu0.c.b16.cont [5/8] 0, 128
      %827 = vxpose.xlu0.c.b16.cont [6/8] 0, 128
      %828 = vxpose.xlu0.c.b16.cont [7/8] 0, 128
      %829 = vxpose.xlu0.c.b16.end [8/8] 0, 128
      %v830 = vpop.trf.xlu0
      %v831 = vpop.trf.xlu0
      %v832 = vpop.trf.xlu0
      %v833 = vpop.trf.xlu0
      %v834 = vpop.trf.xlu0
      %v835 = vpop.trf.xlu0
      %v836 = vpop.trf.xlu0
      %v837 = vpop.trf.xlu0
      %v839 = vsel %vm397, %v830, 0
      %v842 = vsel %vm397, %v831, 0
      %v845 = vsel %vm397, %v832, 0
      %v848 = vsel %vm397, %v833, 0
      %v851 = vsel %vm397, %v834, 0
      %v854 = vsel %vm397, %v835, 0
      %v857 = vsel %vm397, %v836, 0
      %v860 = vsel %vm397, %v837, 0
      %862 = vmatpush.bf16.msra.mxu0 0
      %863 = vmatpush.bf16.msra.mxu0 0
      %864 = vmatpush.bf16.msra.mxu0 0
      %865 = vmatpush.bf16.msra.mxu0 0
      %866 = vmatpush.bf16.msra.mxu0 0
      %867 = vmatpush.bf16.msra.mxu0 0
      %868 = vmatpush.bf16.msra.mxu0 %v473
      %869 = vmatpush.bf16.msra.mxu0 %v472
      %870 = vmatmul.bf16.gmra.mxu0 %v839
      %v871 = vpop.f32.mrf.mxu0
      %v872 = vadd.f32 %v579, %v871
      %v873 = vpop.f32.mrf.mxu0
      %v874 = vadd.f32 %v580, %v873
      %875 = vmatmul.bf16.gmra.mxu0 %v842
      %v876 = vpop.f32.mrf.mxu0
      %v877 = vadd.f32 %v581, %v876
      %v878 = vpop.f32.mrf.mxu0
      %v879 = vadd.f32 %v582, %v878
      %880 = vmatmul.bf16.gmra.mxu0 %v845
      %v881 = vpop.f32.mrf.mxu0
      %v882 = vadd.f32 %v583, %v881
      %v883 = vpop.f32.mrf.mxu0
      %v884 = vadd.f32 %v584, %v883
      %885 = vmatmul.bf16.gmra.mxu0 %v848
      %v886 = vpop.f32.mrf.mxu0
      %v887 = vadd.f32 %v585, %v886
      %v888 = vpop.f32.mrf.mxu0
      %v889 = vadd.f32 %v586, %v888
      %890 = vmatmul.bf16.gmra.mxu0 %v851
      %v891 = vpop.f32.mrf.mxu0
      %v892 = vadd.f32 %v587, %v891
      %v893 = vpop.f32.mrf.mxu0
      %v894 = vadd.f32 %v588, %v893
      %895 = vmatmul.bf16.gmra.mxu0 %v854
      %v896 = vpop.f32.mrf.mxu0
      %v897 = vadd.f32 %v589, %v896
      %v898 = vpop.f32.mrf.mxu0
      %v899 = vadd.f32 %v590, %v898
      %900 = vmatmul.bf16.gmra.mxu0 %v857
      %v901 = vpop.f32.mrf.mxu0
      %v902 = vadd.f32 %v591, %v901
      %v903 = vpop.f32.mrf.mxu0
      %v904 = vadd.f32 %v592, %v903
      %905 = vmatmul.bf16.gmra.mxu0 %v860
      %v906 = vpop.f32.mrf.mxu0
      %v907 = vadd.f32 %v593, %v906
      %v908 = vpop.f32.mrf.mxu0
      %v909 = vadd.f32 %v594, %v908
      %910 = vdwg.mxu0
      %v911 = vmax.f32 %v872, %v882
      %v912 = vmax.f32 %v874, %v884
      %v913 = vmax.f32 %v877, %v887
      %v914 = vmax.f32 %v879, %v889
      %v915 = vmax.f32 %v911, %v892
      %v916 = vmax.f32 %v912, %v894
      %v917 = vmax.f32 %v913, %v897
      %v918 = vmax.f32 %v914, %v899
      %v919 = vmax.f32 %v915, %v902
      %v920 = vmax.f32 %v916, %v904
      %v921 = vmax.f32 %v917, %v907
      %v922 = vmax.f32 %v918, %v909
      %v923 = vmax.f32 %v919, %v920
      %v924 = vmax.f32 %v921, %v922
      %v925 = vmax.f32 %v923, %v924
      %v926 = vrot.slane %v925, 4
      %v927 = vmax.f32 %v925, %v926
      %v928 = vrot.slane %v927, 2
      %v929 = vmax.f32 %v927, %v928
      %v930 = vrot.slane %v929, 1
      %v931 = vmax.f32 %v929, %v930
      %v932 = vsub.f32 %v872, %v931
      %v933 = vsub.f32 %v874, %v931
      %v934 = vsub.f32 %v877, %v931
      %v935 = vsub.f32 %v879, %v931
      %v936 = vsub.f32 %v882, %v931
      %v937 = vsub.f32 %v884, %v931
      %v938 = vsub.f32 %v887, %v931
      %v939 = vsub.f32 %v889, %v931
      %v940 = vsub.f32 %v892, %v931
      %v941 = vsub.f32 %v894, %v931
      %v942 = vsub.f32 %v897, %v931
      %v943 = vsub.f32 %v899, %v931
      %v944 = vsub.f32 %v902, %v931
      %v945 = vsub.f32 %v904, %v931
      %v946 = vsub.f32 %v907, %v931
      %v947 = vsub.f32 %v909, %v931
      %v948 = vmul.f32 %v932, 1.442695
      %v949 = vpow.pop %v948
      %v950 = vmul.f32 %v933, 1.442695
      %v951 = vpow.pop %v950
      %v952 = vmul.f32 %v934, 1.442695
      %v953 = vpow.pop %v952
      %v954 = vmul.f32 %v935, 1.442695
      %v955 = vpow.pop %v954
      %v956 = vmul.f32 %v936, 1.442695
      %v957 = vpow.pop %v956
      %v958 = vmul.f32 %v937, 1.442695
      %v959 = vpow.pop %v958
      %v960 = vmul.f32 %v938, 1.442695
      %v961 = vpow.pop %v960
      %v962 = vmul.f32 %v939, 1.442695
      %v963 = vpow.pop %v962
      %v964 = vmul.f32 %v940, 1.442695
      %v965 = vpow.pop %v964
      %v966 = vmul.f32 %v941, 1.442695
      %v967 = vpow.pop %v966
      %v968 = vmul.f32 %v942, 1.442695
      %v969 = vpow.pop %v968
      %v970 = vmul.f32 %v943, 1.442695
      %v971 = vpow.pop %v970
      %v972 = vmul.f32 %v944, 1.442695
      %v973 = vpow.pop %v972
      %v974 = vmul.f32 %v945, 1.442695
      %v975 = vpow.pop %v974
      %v976 = vmul.f32 %v946, 1.442695
      %v977 = vpow.pop %v976
      %v978 = vmul.f32 %v947, 1.442695
      %v979 = vpow.pop %v978
      %v980 = vadd.f32 %v949, %v951
      %v981 = vadd.f32 %v980, %v953
      %v982 = vadd.f32 %v981, %v955
      %v983 = vadd.f32 %v982, %v957
      %v984 = vadd.f32 %v983, %v959
      %v985 = vadd.f32 %v984, %v961
      %v986 = vadd.f32 %v985, %v963
      %v987 = vadd.f32 %v986, %v965
      %v988 = vadd.f32 %v987, %v967
      %v989 = vadd.f32 %v988, %v969
      %v990 = vadd.f32 %v989, %v971
      %v991 = vadd.f32 %v990, %v973
      %v992 = vadd.f32 %v991, %v975
      %v993 = vadd.f32 %v992, %v977
      %v994 = vadd.f32 %v993, %v979
      %v995 = vrot.slane %v994, 4
      %v996 = vadd.f32 %v994, %v995
      %v997 = vrot.slane %v996, 2
      %v998 = vadd.f32 %v996, %v997
      %v999 = vrot.slane %v998, 1
      %v1000 = vadd.f32 %v998, %v999
      %v1001 = vrcp.pop %v1000
      %v1002 = vmul.f32 %v949, %v1001
      %v1003 = vmul.f32 %v951, %v1001
      %v1004 = vmul.f32 %v953, %v1001
      %v1005 = vmul.f32 %v955, %v1001
      %v1006 = vmul.f32 %v957, %v1001
      %v1007 = vmul.f32 %v959, %v1001
      %v1008 = vmul.f32 %v961, %v1001
      %v1009 = vmul.f32 %v963, %v1001
      %v1010 = vmul.f32 %v965, %v1001
      %v1011 = vmul.f32 %v967, %v1001
      %v1012 = vmul.f32 %v969, %v1001
      %v1013 = vmul.f32 %v971, %v1001
      %v1014 = vmul.f32 %v973, %v1001
      %v1015 = vmul.f32 %v975, %v1001
      %v1016 = vmul.f32 %v977, %v1001
      %v1017 = vmul.f32 %v979, %v1001
      %v1018 = vpack.c.bf16 %v1003, %v1002
      %v1019 = vpack.c.bf16 %v1005, %v1004
      %v1020 = vpack.c.bf16 %v1007, %v1006
      %v1021 = vpack.c.bf16 %v1009, %v1008
      %v1022 = vpack.c.bf16 %v1011, %v1010
      %v1023 = vpack.c.bf16 %v1013, %v1012
      %v1024 = vpack.c.bf16 %v1015, %v1014
      %v1025 = vpack.c.bf16 %v1017, %v1016
      %1026 = vmatpush.bf16.msra.mxu0 %v1025
      %1027 = vmatpush.bf16.msra.mxu0 %v1024
      %1028 = vmatpush.bf16.msra.mxu0 %v1023
      %1029 = vmatpush.bf16.msra.mxu0 %v1022
      %1030 = vmatpush.bf16.msra.mxu0 %v1021
      %1031 = vmatpush.bf16.msra.mxu0 %v1020
      %1032 = vmatpush.bf16.msra.mxu0 %v1019
      %1033 = vmatpush.bf16.msra.mxu0 %v1018
      %1034 = vmatmul.bf16.gmra.mxu0 %v313
      %v1035 = vpop.f32.mrf.mxu0
      %v1036 = vadd.f32 0.0, %v1035
      %v1037 = vpop.f32.mrf.mxu0
      %v1038 = vadd.f32 0.0, %v1037
      %1039 = vmatmul.bf16.gmra.mxu0 %v314
      %v1040 = vpop.f32.mrf.mxu0
      %v1041 = vadd.f32 0.0, %v1040
      %v1042 = vpop.f32.mrf.mxu0
      %v1043 = vadd.f32 0.0, %v1042
      %1044 = vdwg.mxu0
      %1045 = vst [vmem:[%s307] sm:$0xff] %v1036
      %1046 = vst [vmem:[%s307 + $0x8] sm:$0xff] %v1038
      %1047 = vst [vmem:[%s307 + $0x10] sm:$0xff] %v1041
      %1048 = vst [vmem:[%s307 + $0x18] sm:$0xff] %v1043
      %p1049 = scmp.lt.s32.totalorder %s21, 1
      %s1050 = scalar_select %p1049, %s21, 1
      %p1051 = scmp.lt.s32.totalorder %s22, 0
      %s1052 = scalar_select %p1051, %s22, 0
      %s1053 = smul.addr %s1050, 4
      %s1054 = sadd.s32 %s1052, %s1053
      %s1055 = smul.addr %s1054, 8
      %s1056 = scalar_lea.vmem %s4, %s1055
      %p1057 = scmp.lt.s32.totalorder %s21, 1
      %s1058 = scalar_select %p1057, %s21, 1
      %p1059 = scmp.lt.s32.totalorder %s22, 0
      %s1060 = scalar_select %p1059, %s22, 0
      %s1061 = smul.addr %s1058, 4
      %s1062 = sadd.s32 %s1060, %s1061
      %s1063 = smul.addr %s1062, 8
      %s1064 = scalar_lea.vmem %s5, %s1063
      // Predicated region
      $region37: #{pab_forward.1} parent=35 // pred_check
        %p1065 = pneg %p147
      $region38: #{pab_forward.1} parent=35 // pred_check_branch
        %1067 = sbr.rel (%p1065) target = $region40
      $region39: #{pab_forward.1} parent=35 // pred_region
        _
      $region40: #{pab_forward.1} parent=35 // pred_fallthru
        _
      // Predicated region
      $region41: #{pab_forward.1} parent=35 // pred_check
        %p1068 = pneg %p175
      $region42: #{pab_forward.1} parent=35 // pred_check_branch
        %1070 = sbr.rel (%p1068) target = $region44
      $region43: #{pab_forward.1} parent=35 // pred_region
        _
      $region44: #{pab_forward.1} parent=35 // pred_fallthru
        _
    $region36: #{pab_forward.1} parent=5 // pred_fallthru
      _
    %p1071 = scmp.le.s32.totalorder 2, %s12
    // Predicated region
    $region45: #{pab_forward.1} parent=5 // pred_check
      %p1072 = pneg %p1071
    $region46: #{pab_forward.1} parent=5 // pred_check_branch
      %1074 = sbr.rel (%p1072) target = $region48
    $region47: #{pab_forward.1} parent=5 // pred_region
      %s1075 = ssub.s32 %s12, 2
      // Predicated region
      $region49: #{pab_forward.1} parent=47 // pred_check
        %p1076 = pneg %p153
      $region50: #{pab_forward.1} parent=47 // pred_check_branch
        %1078 = sbr.rel (%p1076) target = $region52
      $region51: #{pab_forward.1} parent=47 // pred_region
        %p1079 = scmp.lt.s32.totalorder %s23, 1
        %s1080 = scalar_select %p1079, %s23, 1
        %p1081 = scmp.lt.s32.totalorder %s24, 0
        %s1082 = scalar_select %p1081, %s24, 0
        %s1083 = smul.addr %s1080, 4
        %s1084 = sadd.s32 %s1082, %s1083
        %s1085 = smul.addr %s1084, 8
        %s1086 = scalar_lea.vmem %s4, %s1085
      $region52: #{pab_forward.1} parent=47 // pred_fallthru
        _
      // Predicated region
      $region53: #{pab_forward.1} parent=47 // pred_check
        %p1087 = pneg %p181
      $region54: #{pab_forward.1} parent=47 // pred_check_branch
        %1089 = sbr.rel (%p1087) target = $region56
      $region55: #{pab_forward.1} parent=47 // pred_region
        %p1090 = scmp.lt.s32.totalorder %s23, 1
        %s1091 = scalar_select %p1090, %s23, 1
        %p1092 = scmp.lt.s32.totalorder %s24, 0
        %s1093 = scalar_select %p1092, %s24, 0
        %s1094 = smul.addr %s1091, 4
        %s1095 = sadd.s32 %s1093, %s1094
        %s1096 = smul.addr %s1095, 8
        %s1097 = scalar_lea.vmem %s5, %s1096
      $region56: #{pab_forward.1} parent=47 // pred_fallthru
        _
    $region48: #{pab_forward.1} parent=5 // pred_fallthru
      _
  $region6: #{pab_forward.1} parent=0 // loop_footer
    %s16 = sadd.s32 1, %s12
  $region7: #{pab_forward.1} parent=0 // loop_footer_branch
    %11 = sbr.rel target = $region3
  $region8: #{pab_forward.1} parent=0 // loop_exit
    _

</llo_original>
